<compile_context>
chip_gen: v7x
topology: tpu7x:2x2x1
jax: 0.10.0
libtpu: 0.0.40
codegen_flags: <defaults>
</compile_context>

<pallas_src>
import jax
import jax.numpy as jnp
from jax.experimental import pallas as pl
from jax.experimental.pallas import tpu as pltpu

# ----- module hyper-parameters (fixed, small) -----
N_INPUTS = 8
INPUT_NOISE_SIZE = 0
N_OUTPUTS = 4
N_HIDDEN_LAYERS = 2          # -> 2 hidden Linear layers + 1 output Linear
LAYER_SIZE = 32
N_COEFF = 3

IN_DIM = N_INPUTS + INPUT_NOISE_SIZE
OUT_DIM = N_OUTPUTS * N_COEFF
LEAKY_SLOPE = 0.01           # nn.LeakyReLU() default

# Packed-parameter slab layouts (every component starts on an 8-row boundary).
W1_ROW = 0                                   # rows [0, 8)
W2_ROW = 8                                   # rows [8, 40)
B1_ROW = 40                                  # row 40
B2_ROW = 48                                  # row 48
MLP_SLAB_ROWS = 56                           # (56, 32)
HEAD_SLAB_ROWS = 40                          # W_eff rows [0,32), b_eff row 32, pad to 40

ROW_TILE_CAP = 2048                          # tunable; safe for v5e/v6e/v7x VMEM


def _leaky_relu(h):
    # maximum(h, slope*h) == leaky_relu for 0 < slope < 1 (one VPU op).
    return jnp.maximum(h, LEAKY_SLOPE * h)


def _round_up(n, m):
    return -(-n // m) * m


def _select_row_tile(rows, cap=ROW_TILE_CAP):
    """Large, sublane-aligned row tile; keep >=2 grid steps for megacore."""
    if rows <= 8:
        return rows                          # one block == full array (legal)
    half = _round_up(-(-rows // 2), 8)       # ~half the batch, 8-aligned
    return max(8, min(cap, half))


def neural_agent_kernel(x_ref, mlp_ref, head_ref, o_ref):
    """One row-tile of the fused MLP + (pre-folded) polynomial head.

    x_ref    : (row_tile, IN_DIM)
    mlp_ref  : (MLP_SLAB_ROWS, LAYER_SIZE)   packed [W1@0; W2@8; b1@40; b2@48]
    head_ref : (HEAD_SLAB_ROWS, N_OUTPUTS)   packed [W_eff@0; b_eff@32]
    o_ref    : (row_tile, N_OUTPUTS)
    """
    # Static ref slices of the packed slabs (zero runtime cost, 8-row aligned).
    w1 = mlp_ref[W1_ROW:W1_ROW + IN_DIM, :]
    w2 = mlp_ref[W2_ROW:W2_ROW + LAYER_SIZE, :]
    b1 = mlp_ref[B1_ROW:B1_ROW + 1, :]
    b2 = mlp_ref[B2_ROW:B2_ROW + 1, :]
    w_head = head_ref[0:LAYER_SIZE, :]
    b_head = head_ref[LAYER_SIZE:LAYER_SIZE + 1, :]

    h = _leaky_relu(jnp.dot(x_ref[...], w1, preferred_element_type=jnp.float32) + b1)
    h = _leaky_relu(jnp.dot(h, w2, preferred_element_type=jnp.float32) + b2)
    o_ref[...] = jnp.dot(h, w_head, preferred_element_type=jnp.float32) + b_head


def init_params(key):
    """Deterministic init mimicking nn.Linear (uniform +/- 1/sqrt(fan_in))."""
    def linear(k, fan_in, fan_out):
        kw, kb = jax.random.split(k)
        bound = 1.0 / jnp.sqrt(jnp.float32(fan_in))
        w = jax.random.uniform(kw, (fan_in, fan_out), jnp.float32, -bound, bound)
        b = jax.random.uniform(kb, (1, fan_out), jnp.float32, -bound, bound)
        return w, b

    k1, k2, k3 = jax.random.split(key, 3)
    w1, b1 = linear(k1, IN_DIM, LAYER_SIZE)
    w2, b2 = linear(k2, LAYER_SIZE, LAYER_SIZE)
    w3, b3 = linear(k3, LAYER_SIZE, OUT_DIM)
    return (w1, b1, w2, b2, w3, b3)


def pack_params(params, t):
    """Fold the polynomial basis into the output layer and pack params into 2 slabs.

    torch reshape(-1, n_coeff) groups output-layer columns output-major /
    coefficient-minor: column j = o * N_COEFF + c.  Hence
      w_eff[:, o] = sum_c w3[:, o*N_COEFF + c] * t^c,   b_eff analogously.
    """
    w1, b1, w2, b2, w3, b3 = params
    tt = jnp.asarray(t, jnp.float32)
    basis = tt ** jnp.arange(N_COEFF, dtype=jnp.float32)                    # [1, t, t^2]
    w_eff = jnp.einsum("koc,c->ko",
                       w3.reshape(LAYER_SIZE, N_OUTPUTS, N_COEFF), basis)   # (32, 4)
    b_eff = jnp.einsum("oc,c->o",
                       b3.reshape(N_OUTPUTS, N_COEFF), basis)               # (4,)

    mlp_slab = jnp.zeros((MLP_SLAB_ROWS, LAYER_SIZE), jnp.float32)          # (56, 32)
    mlp_slab = mlp_slab.at[W1_ROW:W1_ROW + IN_DIM, :].set(w1)
    mlp_slab = mlp_slab.at[W2_ROW:W2_ROW + LAYER_SIZE, :].set(w2)
    mlp_slab = mlp_slab.at[B1_ROW, :].set(b1[0])
    mlp_slab = mlp_slab.at[B2_ROW, :].set(b2[0])

    head_slab = jnp.zeros((HEAD_SLAB_ROWS, N_OUTPUTS), jnp.float32)         # (40, 4)
    head_slab = head_slab.at[:LAYER_SIZE, :].set(w_eff)
    head_slab = head_slab.at[LAYER_SIZE, :].set(b_eff)
    return mlp_slab, head_slab


def neural_agent_policy(params, x, t, *, row_tile_cap=ROW_TILE_CAP):
    """policy(t) for all batch rows: returns shape (batch * n_outputs,).

    Arbitrarily many stacked evaluations (rows of x) are processed in one
    pallas_call; weights stay VMEM-resident across the grid.  No padded copy
    of x is made: the final ragged block (if any) is handled by Pallas, and
    its junk rows never appear in the (rows, N_OUTPUTS) output.
    """
    rows = x.shape[0]
    row_tile = _select_row_tile(rows, row_tile_cap)
    mlp_slab, head_slab = pack_params(params, t)
    x = x.astype(jnp.float32)

    grid = (pl.cdiv(rows, row_tile),)
    out = pl.pallas_call(
        neural_agent_kernel,
        out_shape=jax.ShapeDtypeStruct((rows, N_OUTPUTS), jnp.float32),
        grid_spec=pltpu.PrefetchScalarGridSpec(
            num_scalar_prefetch=0,
            grid=grid,
            in_specs=[
                # x: one row-tile per grid step
                pl.BlockSpec((row_tile, IN_DIM), lambda i: (i, 0)),
                # packed weights: same block every step -> fetched once, VMEM-resident
                pl.BlockSpec((MLP_SLAB_ROWS, LAYER_SIZE), lambda i: (0, 0)),
                pl.BlockSpec((HEAD_SLAB_ROWS, N_OUTPUTS), lambda i: (0, 0)),
            ],
            out_specs=pl.BlockSpec((row_tile, N_OUTPUTS), lambda i: (i, 0)),
        ),
        compiler_params=pltpu.CompilerParams(
            dimension_semantics=("parallel",)),   # split batch across TensorCores
    )(x, mlp_slab, head_slab)

    # (rows, N_OUTPUTS) row-major flatten == torch's (B*n_outputs,) squeeze ordering.
    return out.reshape(-1)


def reference_policy(params, x, t):
    """Pure-JAX reference of the PyTorch forward (unfused path) for checking."""
    w1, b1, w2, b2, w3, b3 = params
    h = jnp.where(x @ w1 + b1 >= 0, x @ w1 + b1, LEAKY_SLOPE * (x @ w1 + b1))
    h2 = h @ w2 + b2
    h = jnp.where(h2 >= 0, h2, LEAKY_SLOPE * h2)
    coeff = (h @ w3 + b3).reshape(-1, N_COEFF)
    basis = jnp.asarray([t ** i for i in range(N_COEFF)], jnp.float32).reshape(N_COEFF, 1)
    return (coeff @ basis).squeeze()


if __name__ == "__main__":
    key = jax.random.PRNGKey(0)
    kp, kx, ks, kr = jax.random.split(key, 4)
    params = init_params(kp)
    t = 0.5

    # Small-shape case matching the module spec (batch = 2): single full-array block.
    x = jax.random.normal(kx, (2, IN_DIM), jnp.float32)
    out = jax.block_until_ready(neural_agent_policy(params, x, t))
    ref = reference_policy(params, x, t)
    assert out.shape == (2 * N_OUTPUTS,)
    assert jnp.allclose(out, ref, atol=1e-4, rtol=1e-4), (out, ref)

    # Stacked case: 4096 evaluations -> 2 grid steps of 2048 rows (large tiles
    # amortize per-step overhead, 2 steps keep both v7x cores busy).
    x_big = jax.random.normal(ks, (4096, IN_DIM), jnp.float32)
    out_big = jax.block_until_ready(neural_agent_policy(params, x_big, t))
    ref_big = reference_policy(params, x_big, t)
    assert out_big.shape == (4096 * N_OUTPUTS,)
    assert jnp.allclose(out_big, ref_big, atol=1e-4, rtol=1e-4)

    # Ragged case: rows not a multiple of the tile exercises the partial final
    # block path (no explicit zero-padding of x).
    x_rag = jax.random.normal(kr, (1000, IN_DIM), jnp.float32)
    out_rag = jax.block_until_ready(neural_agent_policy(params, x_rag, t))
    ref_rag = reference_policy(params, x_rag, t)
    assert out_rag.shape == (1000 * N_OUTPUTS,)
    assert jnp.allclose(out_rag, ref_rag, atol=1e-4, rtol=1e-4)

    print("KERNEL_OK")
</pallas_src>

<mosaic_0001>
module attributes {stable_mosaic.version = 11 : i64} {
  func.func @neural_agent_kernel(%arg0: i32, %arg1: memref<2x8xf32, #tpu.memory_space<vmem>>, %arg2: memref<56x32xf32, #tpu.memory_space<vmem>>, %arg3: memref<40x4xf32, #tpu.memory_space<vmem>>, %arg4: memref<2x4xf32, #tpu.memory_space<vmem>>) attributes {dimension_semantics = [#tpu.dimension_semantics<parallel>], iteration_bounds = array<i64: 1>, scalar_prefetch = 0 : i64, scratch_operands = 0 : i64, tpu.core_type = #tpu.core_type<tc>, window_params = [{transform_indices = @transform_0, window_bounds = array<i64: 2, 8>}, {pipeline_mode = #tpu.pipeline_mode<synchronous>, transform_indices = @transform_1, window_bounds = array<i64: 56, 32>}, {pipeline_mode = #tpu.pipeline_mode<synchronous>, transform_indices = @transform_2, window_bounds = array<i64: 40, 4>}, {transform_indices = @transform_3, window_bounds = array<i64: 2, 4>}]} {
    %c0 = arith.constant 0 : index
    %c0_0 = arith.constant 0 : index
    %0 = vector.load %arg2[%c0, %c0_0] : memref<56x32xf32, #tpu.memory_space<vmem>>, vector<8x32xf32>
    %c8 = arith.constant 8 : index
    %c0_1 = arith.constant 0 : index
    %1 = vector.load %arg2[%c8, %c0_1] : memref<56x32xf32, #tpu.memory_space<vmem>>, vector<32x32xf32>
    %c40 = arith.constant 40 : index
    %c0_2 = arith.constant 0 : index
    %2 = vector.load %arg2[%c40, %c0_2] : memref<56x32xf32, #tpu.memory_space<vmem>>, vector<1x32xf32>
    %c48 = arith.constant 48 : index
    %c0_3 = arith.constant 0 : index
    %3 = vector.load %arg2[%c48, %c0_3] : memref<56x32xf32, #tpu.memory_space<vmem>>, vector<1x32xf32>
    %c0_4 = arith.constant 0 : index
    %c0_5 = arith.constant 0 : index
    %4 = vector.load %arg3[%c0_4, %c0_5] : memref<40x4xf32, #tpu.memory_space<vmem>>, vector<32x4xf32>
    %c32 = arith.constant 32 : index
    %c0_6 = arith.constant 0 : index
    %5 = vector.load %arg3[%c32, %c0_6] : memref<40x4xf32, #tpu.memory_space<vmem>>, vector<1x4xf32>
    %c0_7 = arith.constant 0 : index
    %c0_8 = arith.constant 0 : index
    %6 = vector.load %arg1[%c0_7, %c0_8] : memref<2x8xf32, #tpu.memory_space<vmem>>, vector<2x8xf32>
    %cst = arith.constant dense<0.000000e+00> : vector<2x32xf32>
    %7 = tpu.matmul %6, %0, %cst {dimension_numbers = #tpu.dot_dimension_numbers<[1], [0], [0], [1], [0, 0, 1, 1], [], []>} : vector<2x8xf32>, vector<8x32xf32>, vector<2x32xf32> -> vector<2x32xf32>
    %8 = vector.broadcast %2 : vector<1x32xf32> to vector<2x32xf32>
    %9 = arith.addf %7, %8 : vector<2x32xf32>
    %cst_9 = arith.constant 0.00999999977 : f32
    %10 = vector.broadcast %cst_9 : f32 to vector<2x32xf32>
    %11 = arith.mulf %10, %9 : vector<2x32xf32>
    %12 = arith.maximumf %9, %11 : vector<2x32xf32>
    %cst_10 = arith.constant dense<0.000000e+00> : vector<2x32xf32>
    %13 = tpu.matmul %12, %1, %cst_10 {dimension_numbers = #tpu.dot_dimension_numbers<[1], [0], [0], [1], [0, 0, 1, 1], [], []>} : vector<2x32xf32>, vector<32x32xf32>, vector<2x32xf32> -> vector<2x32xf32>
    %14 = vector.broadcast %3 : vector<1x32xf32> to vector<2x32xf32>
    %15 = arith.addf %13, %14 : vector<2x32xf32>
    %cst_11 = arith.constant 0.00999999977 : f32
    %16 = vector.broadcast %cst_11 : f32 to vector<2x32xf32>
    %17 = arith.mulf %16, %15 : vector<2x32xf32>
    %18 = arith.maximumf %15, %17 : vector<2x32xf32>
    %cst_12 = arith.constant dense<0.000000e+00> : vector<2x4xf32>
    %19 = tpu.matmul %18, %4, %cst_12 {dimension_numbers = #tpu.dot_dimension_numbers<[1], [0], [0], [1], [0, 0, 1, 1], [], []>} : vector<2x32xf32>, vector<32x4xf32>, vector<2x4xf32> -> vector<2x4xf32>
    %20 = vector.broadcast %5 : vector<1x4xf32> to vector<2x4xf32>
    %21 = arith.addf %19, %20 : vector<2x4xf32>
    %c0_13 = arith.constant 0 : index
    %c0_14 = arith.constant 0 : index
    %22 = vector.load %arg4[%c0_13, %c0_14] : memref<2x4xf32, #tpu.memory_space<vmem>>, vector<2x4xf32>
    tpu.vector_store %arg4[%c0_13, %c0_14], %21 {strides = array<i32>} : memref<2x4xf32, #tpu.memory_space<vmem>>, vector<2x4xf32>,
    return
  }
  func.func @transform_0(%arg0: i32) -> (i32, i32) {
    %c0_i32 = arith.constant 0 : i32
    %c0_i32_0 = arith.constant 0 : i32
    return %arg0, %c0_i32 : i32, i32
  }
  func.func @transform_1(%arg0: i32) -> (i32, i32) {
    %c0_i32 = arith.constant 0 : i32
    %c0_i32_0 = arith.constant 0 : i32
    %c0_i32_1 = arith.constant 0 : i32
    return %c0_i32, %c0_i32_0 : i32, i32
  }
  func.func @transform_2(%arg0: i32) -> (i32, i32) {
    %c0_i32 = arith.constant 0 : i32
    %c0_i32_0 = arith.constant 0 : i32
    %c0_i32_1 = arith.constant 0 : i32
    return %c0_i32, %c0_i32_0 : i32, i32
  }
  func.func @transform_3(%arg0: i32) -> (i32, i32) {
    %c0_i32 = arith.constant 0 : i32
    %c0_i32_0 = arith.constant 0 : i32
    return %arg0, %c0_i32 : i32, i32
  }
}

</mosaic_0001>

<llo_original>
// kernel: tpu_custom_call.1
$region0: #{tpu_custom_call.1}
  #allocation0 [shape = 'u32[]', space=smem, size = 0x4, offset = 0x4, fixed_abs, tag = 'smem constant byte address 0x4 - core index']
  #allocation1 [shape = 'u32[144,128]{1,0:T(1,128)}', space=vmem, size = 0x12000, scoped, tag = 'internal scratch']
  %s0 = inlined_call_operand.vmem [shape: f32[2,8], index: 0, kind: input, shape index: {}]
  %s1 = inlined_call_operand.vmem [shape: f32[56,32], index: 1, kind: input, shape index: {}]
  %s2 = inlined_call_operand.vmem [shape: f32[40,4], index: 2, kind: input, shape index: {}]
  %s3 = inlined_call_operand.hbm [shape: f32[2,4], index: 3, kind: output, shape index: {}]
  %s4 = sld [smem:[#allocation0]]
  $region22: #{tpu_custom_call.1} parent=0
    _
  %s6 = ssub.s32 1, %s4
  %s7 = scalar_select 0, %s6, %s4
  $region1: #{tpu_custom_call.1} parent=0
    #allocation2 [shape = 'u8[1024]{0}', space=vmem, size = 0x400, scoped, tag = 'output window, operand 0, single buffered']
    #allocation3 [shape = 's32[1]{0}', space=sflag, size = 0x4, scoped, tag = 'scoped memory for tpu_custom_call.1']
    %8 = vsyncpa [#allocation3], 0
    // Predicated region
    $region2: #{tpu_custom_call.1} parent=1 // pred_check
      _
    $region3: #{tpu_custom_call.1} parent=1 // pred_check_branch
      %10 = sbr.rel (0) target = $region5
    $region4: #{tpu_custom_call.1} parent=1 // pred_region
      _
    $region5: #{tpu_custom_call.1} parent=1 // pred_fallthru
      _
    // Predicated region
    $region6: #{tpu_custom_call.1} parent=1 // pred_check
      _
    $region7: #{tpu_custom_call.1} parent=1 // pred_check_branch
      %12 = sbr.rel (0) target = $region9
    $region8: #{tpu_custom_call.1} parent=1 // pred_region
      _
    $region9: #{tpu_custom_call.1} parent=1 // pred_fallthru
      _
    // Predicated region
    $region10: #{tpu_custom_call.1} parent=1 // pred_check
      _
    $region11: #{tpu_custom_call.1} parent=1 // pred_check_branch
      %14 = sbr.rel (0) target = $region13
    $region12: #{tpu_custom_call.1} parent=1 // pred_region
      _
    $region13: #{tpu_custom_call.1} parent=1 // pred_fallthru
      _
    %v15 = vld [vmem:[%s1] sm:$0xff]
    %v16 = vld [vmem:[%s1 + $0x8] sm:$0xff]
    %v17 = vld [vmem:[%s1 + $0x10] sm:$0xff]
    %v18 = vld [vmem:[%s1 + $0x18] sm:$0xff]
    %v19 = vld [vmem:[%s1 + $0x20] sm:$0xff]
    %v20 = vld [vmem:[%s1 + $0x28] sm:$0x1]
    %v21 = vld [vmem:[%s1 + $0x30] sm:$0x1]
    %v22 = vld [vmem:[%s2] sm:$0xff]
    %v23 = vld [vmem:[%s2 + $0x8] sm:$0xff]
    %v24 = vld [vmem:[%s2 + $0x10] sm:$0xff]
    %v25 = vld [vmem:[%s2 + $0x18] sm:$0xff]
    %v26 = vld [vmem:[%s2 + $0x20] sm:$0x1]
    %v27 = vld [vmem:[%s0] sm:$0x3]
    %v28 = vlaneseq
    %v29 = vshrl.u32 %v28, 7
    %v30 = vsub.s32 0, %v29
    %v31 = vrot.slane %v20, %v30
    %vm32 = vcmask 64512
    %v34 = vsel %vm32, %v27, 0
    %36 = vmatprep.subr.mxu0 0.0
    %37 = vmatpush1.msra.mxu0 %v15
    %38 = vmatprep.subr.mxu0 0.0
    %39 = vmatpush1.msra.mxu0 0.0
    %40 = vmatprep.subr.mxu0 0.0
    %41 = vmatpush1.msra.mxu0 0.0
    %42 = vmatprep.subr.mxu0 0.0
    %43 = vmatpush1.msra.mxu0 0.0
    %44 = vmatprep.subr.mxu0 0.0
    %45 = vmatpush1.msra.mxu0 0.0
    %46 = vmatprep.subr.mxu0 0.0
    %47 = vmatpush1.msra.mxu0 0.0
    %48 = vmatprep.subr.mxu0 0.0
    %49 = vmatpush1.msra.mxu0 0.0
    %50 = vmatprep.subr.mxu0 0.0
    %51 = vmatpush1.msra.mxu0 0.0
    %52 = vmatprep.subr.mxu0 0.0
    %53 = vmatpush1.msra.mxu0 0.0
    %54 = vmatprep.subr.mxu0 0.0
    %55 = vmatpush1.msra.mxu0 0.0
    %56 = vmatprep.subr.mxu0 0.0
    %57 = vmatpush1.msra.mxu0 0.0
    %58 = vmatprep.subr.mxu0 0.0
    %59 = vmatpush1.msra.mxu0 0.0
    %60 = vmatprep.subr.mxu0 0.0
    %61 = vmatpush1.msra.mxu0 0.0
    %62 = vmatprep.subr.mxu0 0.0
    %63 = vmatpush1.msra.mxu0 0.0
    %64 = vmatprep.subr.mxu0 0.0
    %65 = vmatpush1.msra.mxu0 0.0
    %66 = vmatprep.subr.mxu0 0.0
    %67 = vmatpush1.msra.mxu0 0.0
    %68 = vmatprep.subr.mxu0 0.0
    %69 = vmatpush1.msra.mxu0 0.0
    %70 = vmatprep.subr.mxu0 0.0
    %71 = vmatpush1.msra.mxu0 0.0
    %72 = vmatprep.subr.mxu0 0.0
    %73 = vmatpush1.msra.mxu0 0.0
    %74 = vmatprep.subr.mxu0 0.0
    %75 = vmatpush1.msra.mxu0 0.0
    %76 = vmatprep.subr.mxu0 0.0
    %77 = vmatpush1.msra.mxu0 0.0
    %78 = vmatprep.subr.mxu0 0.0
    %79 = vmatpush1.msra.mxu0 0.0
    %80 = vmatprep.subr.mxu0 0.0
    %81 = vmatpush1.msra.mxu0 0.0
    %82 = vmatprep.subr.mxu0 0.0
    %83 = vmatpush1.msra.mxu0 0.0
    %84 = vmatprep.subr.mxu0 0.0
    %85 = vmatpush1.msra.mxu0 0.0
    %86 = vmatprep.subr.mxu0 0.0
    %87 = vmatpush1.msra.mxu0 0.0
    %88 = vmatprep.subr.mxu0 0.0
    %89 = vmatpush1.msra.mxu0 0.0
    %90 = vmatprep.subr.mxu0 0.0
    %91 = vmatpush1.msra.mxu0 0.0
    %92 = vmatprep.subr.mxu0 0.0
    %93 = vmatpush1.msra.mxu0 0.0
    %94 = vmatprep.subr.mxu0 0.0
    %95 = vmatpush1.msra.mxu0 0.0
    %96 = vmatprep.subr.mxu0 0.0
    %97 = vmatpush1.msra.mxu0 0.0
    %98 = vmatprep.subr.mxu0 0.0
    %99 = vmatpush1.msra.mxu0 0.0
    %100 = vmatprep.mubr.f32.mxu0 0.0
    %101 = vmatmul.mubr.f32.gmra.mrb[0].mxu0 %v34
    %v102 = vpop.f32.mrb[0].mxu0
    %v103 = vadd.f32 %v31, %v102
    %v104 = vpop.f32.mrb[0].mxu0
    %105 = vdwg.mxu0
    %v106 = vmul.f32 %v103, 0.01
    %v107 = vmax.f32 %v103, %v106
    %v108 = vlaneseq
    %v109 = vshrl.u32 %v108, 7
    %v110 = vsub.s32 0, %v109
    %v111 = vrot.slane %v21, %v110
    %vm112 = vcmask 261120
    %v114 = vsel %vm112, %v107, 0
    %116 = vmatprep.subr.mxu0 0.0
    %117 = vmatpush1.msra.mxu0 %v16
    %118 = vmatprep.subr.mxu0 0.0
    %119 = vmatpush1.msra.mxu0 %v17
    %120 = vmatprep.subr.mxu0 0.0
    %121 = vmatpush1.msra.mxu0 %v18
    %122 = vmatprep.subr.mxu0 0.0
    %123 = vmatpush1.msra.mxu0 %v19
    %124 = vmatprep.subr.mxu0 0.0
    %125 = vmatpush1.msra.mxu0 0.0
    %126 = vmatprep.subr.mxu0 0.0
    %127 = vmatpush1.msra.mxu0 0.0
    %128 = vmatprep.subr.mxu0 0.0
    %129 = vmatpush1.msra.mxu0 0.0
    %130 = vmatprep.subr.mxu0 0.0
    %131 = vmatpush1.msra.mxu0 0.0
    %132 = vmatprep.subr.mxu0 0.0
    %133 = vmatpush1.msra.mxu0 0.0
    %134 = vmatprep.subr.mxu0 0.0
    %135 = vmatpush1.msra.mxu0 0.0
    %136 = vmatprep.subr.mxu0 0.0
    %137 = vmatpush1.msra.mxu0 0.0
    %138 = vmatprep.subr.mxu0 0.0
    %139 = vmatpush1.msra.mxu0 0.0
    %140 = vmatprep.subr.mxu0 0.0
    %141 = vmatpush1.msra.mxu0 0.0
    %142 = vmatprep.subr.mxu0 0.0
    %143 = vmatpush1.msra.mxu0 0.0
    %144 = vmatprep.subr.mxu0 0.0
    %145 = vmatpush1.msra.mxu0 0.0
    %146 = vmatprep.subr.mxu0 0.0
    %147 = vmatpush1.msra.mxu0 0.0
    %148 = vmatprep.subr.mxu0 0.0
    %149 = vmatpush1.msra.mxu0 0.0
    %150 = vmatprep.subr.mxu0 0.0
    %151 = vmatpush1.msra.mxu0 0.0
    %152 = vmatprep.subr.mxu0 0.0
    %153 = vmatpush1.msra.mxu0 0.0
    %154 = vmatprep.subr.mxu0 0.0
    %155 = vmatpush1.msra.mxu0 0.0
    %156 = vmatprep.subr.mxu0 0.0
    %157 = vmatpush1.msra.mxu0 0.0
    %158 = vmatprep.subr.mxu0 0.0
    %159 = vmatpush1.msra.mxu0 0.0
    %160 = vmatprep.subr.mxu0 0.0
    %161 = vmatpush1.msra.mxu0 0.0
    %162 = vmatprep.subr.mxu0 0.0
    %163 = vmatpush1.msra.mxu0 0.0
    %164 = vmatprep.subr.mxu0 0.0
    %165 = vmatpush1.msra.mxu0 0.0
    %166 = vmatprep.subr.mxu0 0.0
    %167 = vmatpush1.msra.mxu0 0.0
    %168 = vmatprep.subr.mxu0 0.0
    %169 = vmatpush1.msra.mxu0 0.0
    %170 = vmatprep.subr.mxu0 0.0
    %171 = vmatpush1.msra.mxu0 0.0
    %172 = vmatprep.subr.mxu0 0.0
    %173 = vmatpush1.msra.mxu0 0.0
    %174 = vmatprep.subr.mxu0 0.0
    %175 = vmatpush1.msra.mxu0 0.0
    %176 = vmatprep.subr.mxu0 0.0
    %177 = vmatpush1.msra.mxu0 0.0
    %178 = vmatprep.subr.mxu0 0.0
    %179 = vmatpush1.msra.mxu0 0.0
    %180 = vmatprep.mubr.f32.mxu0 0.0
    %181 = vmatmul.mubr.f32.gmra.mrb[0].mxu0 %v114
    %v182 = vpop.f32.mrb[0].mxu0
    %v183 = vadd.f32 %v111, %v182
    %v184 = vpop.f32.mrb[0].mxu0
    %185 = vdwg.mxu0
    %v186 = vmul.f32 %v183, 0.01
    %v187 = vmax.f32 %v183, %v186
    %v188 = vlaneseq
    %v189 = vshrl.u32 %v188, 7
    %v190 = vsub.s32 0, %v189
    %v191 = vrot.slane %v26, %v190
    %v193 = vsel %vm112, %v187, 0
    %195 = vmatprep.subr.mxu0 0.0
    %196 = vmatpush1.msra.mxu0 %v22
    %197 = vmatprep.subr.mxu0 0.0
    %198 = vmatpush1.msra.mxu0 %v23
    %199 = vmatprep.subr.mxu0 0.0
    %200 = vmatpush1.msra.mxu0 %v24
    %201 = vmatprep.subr.mxu0 0.0
    %202 = vmatpush1.msra.mxu0 %v25
    %203 = vmatprep.subr.mxu0 0.0
    %204 = vmatpush1.msra.mxu0 0.0
    %205 = vmatprep.subr.mxu0 0.0
    %206 = vmatpush1.msra.mxu0 0.0
    %207 = vmatprep.subr.mxu0 0.0
    %208 = vmatpush1.msra.mxu0 0.0
    %209 = vmatprep.subr.mxu0 0.0
    %210 = vmatpush1.msra.mxu0 0.0
    %211 = vmatprep.subr.mxu0 0.0
    %212 = vmatpush1.msra.mxu0 0.0
    %213 = vmatprep.subr.mxu0 0.0
    %214 = vmatpush1.msra.mxu0 0.0
    %215 = vmatprep.subr.mxu0 0.0
    %216 = vmatpush1.msra.mxu0 0.0
    %217 = vmatprep.subr.mxu0 0.0
    %218 = vmatpush1.msra.mxu0 0.0
    %219 = vmatprep.subr.mxu0 0.0
    %220 = vmatpush1.msra.mxu0 0.0
    %221 = vmatprep.subr.mxu0 0.0
    %222 = vmatpush1.msra.mxu0 0.0
    %223 = vmatprep.subr.mxu0 0.0
    %224 = vmatpush1.msra.mxu0 0.0
    %225 = vmatprep.subr.mxu0 0.0
    %226 = vmatpush1.msra.mxu0 0.0
    %227 = vmatprep.subr.mxu0 0.0
    %228 = vmatpush1.msra.mxu0 0.0
    %229 = vmatprep.subr.mxu0 0.0
    %230 = vmatpush1.msra.mxu0 0.0
    %231 = vmatprep.subr.mxu0 0.0
    %232 = vmatpush1.msra.mxu0 0.0
    %233 = vmatprep.subr.mxu0 0.0
    %234 = vmatpush1.msra.mxu0 0.0
    %235 = vmatprep.subr.mxu0 0.0
    %236 = vmatpush1.msra.mxu0 0.0
    %237 = vmatprep.subr.mxu0 0.0
    %238 = vmatpush1.msra.mxu0 0.0
    %239 = vmatprep.subr.mxu0 0.0
    %240 = vmatpush1.msra.mxu0 0.0
    %241 = vmatprep.subr.mxu0 0.0
    %242 = vmatpush1.msra.mxu0 0.0
    %243 = vmatprep.subr.mxu0 0.0
    %244 = vmatpush1.msra.mxu0 0.0
    %245 = vmatprep.subr.mxu0 0.0
    %246 = vmatpush1.msra.mxu0 0.0
    %247 = vmatprep.subr.mxu0 0.0
    %248 = vmatpush1.msra.mxu0 0.0
    %249 = vmatprep.subr.mxu0 0.0
    %250 = vmatpush1.msra.mxu0 0.0
    %251 = vmatprep.subr.mxu0 0.0
    %252 = vmatpush1.msra.mxu0 0.0
    %253 = vmatprep.subr.mxu0 0.0
    %254 = vmatpush1.msra.mxu0 0.0
    %255 = vmatprep.subr.mxu0 0.0
    %256 = vmatpush1.msra.mxu0 0.0
    %257 = vmatprep.subr.mxu0 0.0
    %258 = vmatpush1.msra.mxu0 0.0
    %259 = vmatprep.mubr.f32.mxu0 0.0
    %260 = vmatmul.mubr.f32.gmra.mrb[0].mxu0 %v193
    %v261 = vpop.f32.mrb[0].mxu0
    %v262 = vadd.f32 %v191, %v261
    %v263 = vpop.f32.mrb[0].mxu0
    %264 = vdwg.mxu0
    %vm265 = vcmask 25600
    %266 = vst.msk [vmem:[#allocation2] sm:$0x3] %vm265, %v262
    // Predicated region
    $region14: #{tpu_custom_call.1} parent=1 // pred_check
      _
    $region15: #{tpu_custom_call.1} parent=1 // pred_check_branch
      %268 = sbr.rel (0) target = $region17
    $region16: #{tpu_custom_call.1} parent=1 // pred_region
      %s270 = ssub.s32 32, 32
      %271 = vsyncadd [#allocation3], %s270
      %s273 = sshll.u32 [#allocation2], 4
      %s274 = int_to_ptr.vmem [resolvable:$true] %s273
      %276 = dma.vmem_to_hbm [thread:$0]  %s274, 32, %s3, [#allocation3]
    $region17: #{tpu_custom_call.1} parent=1 // pred_fallthru
      _
    // Predicated region
    $region18: #{tpu_custom_call.1} parent=1 // pred_check
      _
    $region19: #{tpu_custom_call.1} parent=1 // pred_check_branch
      %278 = sbr.rel (0) target = $region21
    $region20: #{tpu_custom_call.1} parent=1 // pred_region
      %279 = dma.done [#allocation3], 32
    $region21: #{tpu_custom_call.1} parent=1 // pred_fallthru
      _
    %280 = vsyncpa [#allocation3], 1

</llo_original>
